<compile_context>
chip_gen: v6e
topology: v6e:2x2x1
jax: 0.10.0
libtpu: 0.0.40
codegen_flags: <defaults>
</compile_context>

<pallas_src>
import jax
import jax.numpy as jnp
from jax.experimental import pallas as pl
from jax.experimental.pallas import tpu as pltpu


def patch_proj_kernel(x_ref, w_ref, pos_ref, o_ref):
    # x_ref:   (1, TM, K)  row tile of patches for one batch element
    # w_ref:   (K, E)      projection weight (resident; constant index_map)
    # pos_ref: (TM, E)     positional rows 1..N for this tile, with bias folded in
    # o_ref:   (1, TM, E)  output tile (aligned, full-block store)
    x = x_ref[0]                                                   # (TM, K)
    proj = jnp.dot(x, w_ref[...], preferred_element_type=jnp.float32)
    o_ref[0, :, :] = (proj + pos_ref[...]).astype(o_ref.dtype)


def _pick_row_tile(n_patches, max_rows=256):
    """Largest multiple-of-8 divisor of n_patches (<= max_rows).

    Falls back to the full patch axis (always a legal block dim) when
    n_patches is not divisible by 8 (e.g. 196 patches for 224/16 ViT).
    """
    best = None
    t = 8
    while t <= min(n_patches, max_rows):
        if n_patches % t == 0:
            best = t
        t += 8
    return best if best is not None else n_patches


def patch_embedding_forward(x, w_t, bias, cls_emb, pos_emb, patch_size,
                            *, compute_dtype=None, max_row_tile=256):
    """x: (B, C, H, W) float32, NCHW like PyTorch.

    w_t:     (K, E)  projection weight, already transposed vs. torch's (E, K)
    bias:    (E,)
    cls_emb: (E,)
    pos_emb: (N+1, E)
    compute_dtype: optionally cast matmul operands (e.g. jnp.bfloat16 on
                   v6e/v7x); accumulation and the pos add stay in f32.
    """
    b, c, h, w = x.shape
    n = (h // patch_size) * (w // patch_size)
    k = patch_size * patch_size * c
    e = w_t.shape[1]
    out_dtype = x.dtype

    # --- wrapper glue (matches torch permute(0,2,3,1) + flat reshape) -------
    x3 = jnp.transpose(x, (0, 2, 3, 1)).reshape(b, n, k)           # (B, N, K)

    # Fold constants: bias into positional rows 1..N; cls row is batch
    # invariant and handled entirely outside the kernel.
    pos_plus = (pos_emb[1:, :] + bias[None, :]).astype(jnp.float32)  # (N, E)
    cls_row = (cls_emb + pos_emb[0, :]).reshape(1, 1, e)             # (1,1,E)

    if compute_dtype is not None:
        x3 = x3.astype(compute_dtype)
        w_t = w_t.astype(compute_dtype)

    tm = _pick_row_tile(n, max_row_tile)
    assert n % tm == 0
    grid = (b, n // tm)

    itemsize = jnp.dtype(x3.dtype).itemsize
    cost = pl.CostEstimate(
        flops=2 * b * n * k * e,
        transcendentals=0,
        bytes_accessed=(b * n * k + k * e) * itemsize
        + (n * e + b * n * e) * jnp.dtype(jnp.float32).itemsize,
    )

    patches_out = pl.pallas_call(
        patch_proj_kernel,
        out_shape=jax.ShapeDtypeStruct((b, n, e), out_dtype),
        grid_spec=pltpu.PrefetchScalarGridSpec(
            num_scalar_prefetch=0,
            grid=grid,
            in_specs=[
                pl.BlockSpec((1, tm, k), lambda bi, ti: (bi, ti, 0)),
                # Constant index_map -> weight stays resident across steps.
                pl.BlockSpec((k, e), lambda bi, ti: (0, 0)),
                pl.BlockSpec((tm, e), lambda bi, ti: (ti, 0)),
            ],
            out_specs=pl.BlockSpec((1, tm, e), lambda bi, ti: (bi, ti, 0)),
        ),
        compiler_params=pltpu.CompilerParams(
            dimension_semantics=("parallel", "parallel"),
            vmem_limit_bytes=32 * 1024 * 1024,
        ),
        cost_estimate=cost,
    )(x3, w_t, pos_plus)

    # Prepend the (batch-invariant) class-token row with one cheap XLA op.
    cls_rows = jnp.broadcast_to(cls_row, (b, 1, e)).astype(out_dtype)
    return jnp.concatenate([cls_rows, patches_out], axis=1)        # (B, N+1, E)


def reference_forward(x, w_t, bias, cls_emb, pos_emb, patch_size):
    b, c, h, w = x.shape
    n = (h // patch_size) * (w // patch_size)
    k = patch_size * patch_size * c
    xp = jnp.transpose(x, (0, 2, 3, 1)).reshape(b, n, k)
    proj = xp @ w_t + bias
    cls = jnp.broadcast_to(cls_emb.reshape(1, 1, -1), (b, 1, w_t.shape[1]))
    out = jnp.concatenate([cls, proj], axis=1)
    return out + pos_emb


if __name__ == "__main__":
    # Small shapes consistent with the module's forward.
    B, C, H, W = 2, 4, 16, 16
    PATCH = 4
    EMB = 128                            # lane-dense last dim (prod is 768)
    N = (H // PATCH) * (W // PATCH)      # 16 patches
    K = PATCH * PATCH * C                # 64 features per patch

    key = jax.random.PRNGKey(0)
    k_x, k_w, k_b, k_cls, k_pos = jax.random.split(key, 5)

    x = jax.random.normal(k_x, (B, C, H, W), dtype=jnp.float32)
    # nn.Linear(K, EMB): weight is (EMB, K) in torch; store transposed (K, EMB).
    w_t = jax.random.normal(k_w, (K, EMB), dtype=jnp.float32) * 0.02
    bias = jax.random.normal(k_b, (EMB,), dtype=jnp.float32) * 0.02
    cls_emb = jax.random.normal(k_cls, (EMB,), dtype=jnp.float32)
    pos_emb = jax.random.normal(k_pos, (N + 1, EMB), dtype=jnp.float32)

    out = patch_embedding_forward(x, w_t, bias, cls_emb, pos_emb, PATCH)
    out = jax.block_until_ready(out)

    ref = reference_forward(x, w_t, bias, cls_emb, pos_emb, PATCH)
    assert out.shape == (B, N + 1, EMB)
    assert jnp.allclose(out, ref, atol=1e-5, rtol=1e-5)

    print("KERNEL_OK")
</pallas_src>

<mosaic_0001>
module attributes {stable_mosaic.version = 11 : i64} {
  func.func @patch_proj_kernel(%arg0: i32, %arg1: i32, %arg2: memref<1x16x64xf32, #tpu.memory_space<vmem>>, %arg3: memref<64x128xf32, #tpu.memory_space<vmem>>, %arg4: memref<16x128xf32, #tpu.memory_space<vmem>>, %arg5: memref<1x16x128xf32, #tpu.memory_space<vmem>>) attributes {dimension_semantics = [#tpu.dimension_semantics<parallel>, #tpu.dimension_semantics<parallel>], iteration_bounds = array<i64: 2, 1>, scalar_prefetch = 0 : i64, scratch_operands = 0 : i64, tpu.core_type = #tpu.core_type<tc>, window_params = [{transform_indices = @transform_0, window_bounds = array<i64: 1, 16, 64>}, {pipeline_mode = #tpu.pipeline_mode<synchronous>, transform_indices = @transform_1, window_bounds = array<i64: 64, 128>}, {transform_indices = @transform_2, window_bounds = array<i64: 16, 128>}, {transform_indices = @transform_3, window_bounds = array<i64: 1, 16, 128>}]} {
    %c0 = arith.constant 0 : index
    %c0_0 = arith.constant 0 : index
    %c0_1 = arith.constant 0 : index
    %0 = vector.load %arg2[%c0, %c0_0, %c0_1] : memref<1x16x64xf32, #tpu.memory_space<vmem>>, vector<1x16x64xf32>
    %1 = vector.shape_cast %0 : vector<1x16x64xf32> to vector<16x64xf32>
    %c0_2 = arith.constant 0 : index
    %c0_3 = arith.constant 0 : index
    %2 = vector.load %arg3[%c0_2, %c0_3] : memref<64x128xf32, #tpu.memory_space<vmem>>, vector<64x128xf32>
    %cst = arith.constant dense<0.000000e+00> : vector<16x128xf32>
    %3 = tpu.matmul %1, %2, %cst {dimension_numbers = #tpu.dot_dimension_numbers<[1], [0], [0], [1], [0, 0, 1, 1], [], []>} : vector<16x64xf32>, vector<64x128xf32>, vector<16x128xf32> -> vector<16x128xf32>
    %c0_4 = arith.constant 0 : index
    %c0_5 = arith.constant 0 : index
    %4 = vector.load %arg4[%c0_4, %c0_5] : memref<16x128xf32, #tpu.memory_space<vmem>>, vector<16x128xf32>
    %5 = arith.addf %3, %4 : vector<16x128xf32>
    %c0_6 = arith.constant 0 : index
    %c0_7 = arith.constant 0 : index
    %c0_8 = arith.constant 0 : index
    %6 = vector.load %arg5[%c0_6, %c0_7, %c0_8] : memref<1x16x128xf32, #tpu.memory_space<vmem>>, vector<1x16x128xf32>
    %7 = vector.shape_cast %6 : vector<1x16x128xf32> to vector<16x128xf32>
    %8 = vector.shape_cast %5 : vector<16x128xf32> to vector<1x16x128xf32>
    tpu.vector_store %arg5[%c0_6, %c0_7, %c0_8], %8 {strides = array<i32>} : memref<1x16x128xf32, #tpu.memory_space<vmem>>, vector<1x16x128xf32>,
    return
  }
  func.func @transform_0(%arg0: i32, %arg1: i32) -> (i32, i32, i32) {
    %c0_i32 = arith.constant 0 : i32
    %c0_i32_0 = arith.constant 0 : i32
    return %arg0, %arg1, %c0_i32 : i32, i32, i32
  }
  func.func @transform_1(%arg0: i32, %arg1: i32) -> (i32, i32) {
    %c0_i32 = arith.constant 0 : i32
    %c0_i32_0 = arith.constant 0 : i32
    %c0_i32_1 = arith.constant 0 : i32
    return %c0_i32, %c0_i32_0 : i32, i32
  }
  func.func @transform_2(%arg0: i32, %arg1: i32) -> (i32, i32) {
    %c0_i32 = arith.constant 0 : i32
    %c0_i32_0 = arith.constant 0 : i32
    return %arg1, %c0_i32 : i32, i32
  }
  func.func @transform_3(%arg0: i32, %arg1: i32) -> (i32, i32, i32) {
    %c0_i32 = arith.constant 0 : i32
    %c0_i32_0 = arith.constant 0 : i32
    return %arg0, %arg1, %c0_i32 : i32, i32, i32
  }
}

</mosaic_0001>

<llo_original>
// kernel: tpu_custom_call.1
$region0: #{tpu_custom_call.1}
  #allocation0 [shape = 'u32[]', space=smem, size = 0x4, offset = 0x4, fixed_abs, tag = 'smem constant byte address 0x4 - core index']
  #allocation1 [shape = 'u32[144,128]{1,0:T(1,128)}', space=vmem, size = 0x12000, scoped, tag = 'internal scratch']
  %s0 = inlined_call_operand.hbm [shape: f32[2,16,64], index: 0, kind: input, shape index: {}]
  %s1 = inlined_call_operand.hbm [shape: f32[64,128], index: 1, kind: input, shape index: {}]
  %s2 = inlined_call_operand.hbm [shape: f32[16,128], index: 2, kind: input, shape index: {}]
  %s3 = inlined_call_operand.hbm [shape: f32[2,16,128], index: 3, kind: output, shape index: {}]
  %s4 = sld [smem:[#allocation0]]
  $region57: #{tpu_custom_call.1} parent=0
    _
  %s6 = ssub.s32 1, %s4
  %s7 = scalar_select 0, %s6, %s4
  $region1: #{tpu_custom_call.1} parent=0
    #allocation2 [shape = 'u8[16384]{0}', space=vmem, size = 0x4000, scoped, tag = 'input window, operand 0']
    #allocation3 [shape = 's32[2]{0}', space=sflag, size = 0x8, scoped, tag = 'scoped memory for tpu_custom_call.1']
    #allocation4 [shape = 's32[2]{0}', space=sflag, size = 0x8, scoped, tag = 'scoped memory for tpu_custom_call.1']
    #allocation5 [shape = 'u8[32768]{0}', space=vmem, size = 0x8000, scoped, tag = 'input window, operand 1, single buffered']
    #allocation6 [shape = 's32[1]{0}', space=sflag, size = 0x4, scoped, tag = 'scoped memory for tpu_custom_call.1']
    #allocation7 [shape = 'u8[8192]{0}', space=vmem, size = 0x2000, scoped, tag = 'input window, operand 2, single buffered']
    #allocation8 [shape = 'u8[16384]{0}', space=vmem, size = 0x4000, scoped, tag = 'output window, operand 0']
    %8 = vsyncpa [#allocation3], 0
    %s9 = scalar_lea.sflag [#allocation3], 1
    %10 = vsyncpa %s9, 0
    %11 = vsyncpa [#allocation6], 0
    %12 = vsyncpa [#allocation4], 0
    %s13 = scalar_lea.sflag [#allocation4], 1
    %14 = vsyncpa %s13, 0
    loop: start=0, step=1, limit=4
    $region2: #{tpu_custom_call.1} parent=1 // loop_pre_header
      _
    $region3: #{tpu_custom_call.1} parent=1 // loop_header
      %s16 = sphi 0, %s20
      %p17 = scmp.ge.s32.totalorder %s16, 4
      %s23 = sphi 0, %s35
      %s24 = sphi 0, %s31
      %s25 = sphi 0, %s23
      %s26 = sphi 0, %s24
      %s27 = sphi 0, %s25
      %s28 = sphi 0, %s26
      %s40 = sphi 0, %s42
      %s43 = sphi 0, %s40
      %s44 = sphi 0, %s43
      %s60 = sphi 0, %s44
      %s64 = sphi 0, %s64
      %s66 = sphi 0, %s64
      %s67 = sphi 0, %s66
      %s81 = sphi 0, %s67
      %s87 = sphi 0, %s89
      %s90 = sphi 0, %s87
      %s91 = sphi 0, %s90
      %s107 = sphi 0, %s91
      %s115 = sphi 0, %s117
      %s118 = sphi 0, %s115
      %s119 = sphi 0, %s118
      %s135 = sphi 0, %s119
    $region4: #{tpu_custom_call.1} parent=1 // loop_header_branch
      %19 = sbr.rel (%p17) target = $region8
    $region5: #{tpu_custom_call.1} parent=1 // loop_body
      %s21 = ssub.s32 %s16, 1
      %s22 = ssub.s32 %s16, 2
      %s29 = sadd.s32 1, %s24
      %p30 = scmp.ge.s32.totalorder %s29, 1
      %s31 = scalar_select %p30, 0, %s29
      %s32 = sadd.s32 1, %s23
      %s33 = scalar_select %p30, %s32, %s23
      %p34 = scmp.ge.s32.totalorder %s33, 2
      %s35 = scalar_select %p34, 0, %s33
      %s36 = ssub.s32 %s23, %s35
      %s37 = ssub.s32 %s24, %s31
      %s38 = sor.u32 %s36, %s37
      %p39 = scmp.eq.s32.totalorder %s38, 0
      %s41 = sadd.s32 %s40, 1
      %s42 = scalar_select %p39, %s40, %s41
      %p45 = pneg %p39
      %p46 = scmp.eq.s32.totalorder %s16, 1
      %p47 = por %p45, %p46
      %p48 = scmp.ne.s32.totalorder %s40, %s43
      %p49 = scmp.eq.s32.totalorder %s16, 0
      %p50 = por %p48, %p49
      %p51 = scmp.ne.s32.totalorder %s40, %s43
      %p52 = scmp.eq.s32.totalorder %s21, 1
      %p53 = por %p51, %p52
      %p54 = scmp.ne.s32.totalorder %s43, %s44
      %p55 = scmp.eq.s32.totalorder %s21, 0
      %p56 = por %p54, %p55
      %p57 = scmp.ne.s32.totalorder %s43, %s44
      %p58 = scmp.eq.s32.totalorder %s22, 1
      %p59 = por %p57, %p58
      %p61 = scmp.ne.s32.totalorder %s44, %s60
      %p62 = scmp.eq.s32.totalorder %s22, 0
      %p63 = por %p61, %p62
      %s65 = sadd.s32 %s64, 1
      %p68 = scmp.eq.s32.totalorder %s16, 1
      %p69 = scmp.ne.s32.totalorder %s64, %s66
      %p70 = scmp.eq.s32.totalorder %s16, 0
      %p71 = por %p69, %p70
      %p72 = scmp.ne.s32.totalorder %s64, %s66
      %p73 = scmp.eq.s32.totalorder %s21, 1
      %p74 = por %p72, %p73
      %p75 = scmp.ne.s32.totalorder %s66, %s67
      %p76 = scmp.eq.s32.totalorder %s21, 0
      %p77 = por %p75, %p76
      %p78 = scmp.ne.s32.totalorder %s66, %s67
      %p79 = scmp.eq.s32.totalorder %s22, 1
      %p80 = por %p78, %p79
      %p82 = scmp.ne.s32.totalorder %s67, %s81
      %p83 = scmp.eq.s32.totalorder %s22, 0
      %p84 = por %p82, %p83
      %s85 = ssub.s32 %s24, %s31
      %p86 = scmp.eq.s32.totalorder %s85, 0
      %s88 = sadd.s32 %s87, 1
      %s89 = scalar_select %p86, %s87, %s88
      %p92 = pneg %p86
      %p93 = scmp.eq.s32.totalorder %s16, 1
      %p94 = por %p92, %p93
      %p95 = scmp.ne.s32.totalorder %s87, %s90
      %p96 = scmp.eq.s32.totalorder %s16, 0
      %p97 = por %p95, %p96
      %p98 = scmp.ne.s32.totalorder %s87, %s90
      %p99 = scmp.eq.s32.totalorder %s21, 1
      %p100 = por %p98, %p99
      %p101 = scmp.ne.s32.totalorder %s90, %s91
      %p102 = scmp.eq.s32.totalorder %s21, 0
      %p103 = por %p101, %p102
      %p104 = scmp.ne.s32.totalorder %s90, %s91
      %p105 = scmp.eq.s32.totalorder %s22, 1
      %p106 = por %p104, %p105
      %p108 = scmp.ne.s32.totalorder %s91, %s107
      %p109 = scmp.eq.s32.totalorder %s22, 0
      %p110 = por %p108, %p109
      %s111 = ssub.s32 %s23, %s35
      %s112 = ssub.s32 %s24, %s31
      %s113 = sor.u32 %s111, %s112
      %p114 = scmp.eq.s32.totalorder %s113, 0
      %s116 = sadd.s32 %s115, 1
      %s117 = scalar_select %p114, %s115, %s116
      %p120 = pneg %p114
      %p121 = scmp.eq.s32.totalorder %s16, 1
      %p122 = por %p120, %p121
      %p123 = scmp.ne.s32.totalorder %s115, %s118
      %p124 = scmp.eq.s32.totalorder %s16, 0
      %p125 = por %p123, %p124
      %p126 = scmp.ne.s32.totalorder %s115, %s118
      %p127 = scmp.eq.s32.totalorder %s21, 1
      %p128 = por %p126, %p127
      %p129 = scmp.ne.s32.totalorder %s118, %s119
      %p130 = scmp.eq.s32.totalorder %s21, 0
      %p131 = por %p129, %p130
      %p132 = scmp.ne.s32.totalorder %s118, %s119
      %p133 = scmp.eq.s32.totalorder %s22, 1
      %p134 = por %p132, %p133
      %p136 = scmp.ne.s32.totalorder %s119, %s135
      %p137 = scmp.eq.s32.totalorder %s22, 0
      %p138 = por %p136, %p137
      %p139 = scmp.le.s32.totalorder 1, %s16
      %p140 = scmp.lt.s32.totalorder %s16, 3
      %p141 = pnand %p139, %p140
      %p142 = pneg %p141
      // Predicated region
      $region9: #{tpu_custom_call.1} parent=5 // pred_check
        _
      $region10: #{tpu_custom_call.1} parent=5 // pred_check_branch
        %144 = sbr.rel (%p141) target = $region12
      $region11: #{tpu_custom_call.1} parent=5 // pred_region
        %s145 = ssub.s32 %s16, 1
        // Predicated region
        $region13: #{tpu_custom_call.1} parent=11 // pred_check
          %p146 = pneg %p77
        $region14: #{tpu_custom_call.1} parent=11 // pred_check_branch
          %148 = sbr.rel (%p146) target = $region16
        $region15: #{tpu_custom_call.1} parent=11 // pred_region
          %s150 = ssub.s32 1024, 1024
          %151 = vsyncadd [#allocation6], %s150
          %s152 = sshll.u32 [#allocation5], 4
          %s153 = int_to_ptr.vmem [resolvable:$true] %s152
          %158 = dma.hbm_to_vmem [thread:$0]  %s1, 1024, %s153, [#allocation6], 128, 128, 8
        $region16: #{tpu_custom_call.1} parent=11 // pred_fallthru
          _
        // Predicated region
        $region17: #{tpu_custom_call.1} parent=11 // pred_check
          %p159 = pneg %p103
        $region18: #{tpu_custom_call.1} parent=11 // pred_check_branch
          %161 = sbr.rel (%p159) target = $region20
        $region19: #{tpu_custom_call.1} parent=11 // pred_region
          %s162 = smul.u32 2, %s26
          %s164 = ssub.s32 256, 256
          %165 = vsyncadd [#allocation6], %s164
          %s166 = smul.addr %s162, 128
          %s167 = scalar_lea.hbm %s2, %s166
          %s168 = sshll.u32 [#allocation7], 4
          %s169 = int_to_ptr.vmem [resolvable:$true] %s168
          %174 = dma.hbm_to_vmem [thread:$0]  %s167, 256, %s169, [#allocation6], 128, 128, 8
        $region20: #{tpu_custom_call.1} parent=11 // pred_fallthru
          _
      $region12: #{tpu_custom_call.1} parent=5 // pred_fallthru
        _
      %p175 = scmp.lt.s32.totalorder %s16, 2
      // Predicated region
      $region21: #{tpu_custom_call.1} parent=5 // pred_check
        %p176 = pneg %p175
      $region22: #{tpu_custom_call.1} parent=5 // pred_check_branch
        %178 = sbr.rel (%p176) target = $region24
      $region23: #{tpu_custom_call.1} parent=5 // pred_region
        // Predicated region
        $region25: #{tpu_custom_call.1} parent=23 // pred_check
          %p179 = pneg %p50
        $region26: #{tpu_custom_call.1} parent=23 // pred_check_branch
          %181 = sbr.rel (%p179) target = $region28
        $region27: #{tpu_custom_call.1} parent=23 // pred_region
          %s182 = sand.u32 %s40, 1
          %s183 = scalar_lea.sflag [#allocation3], %s182
          %s184 = sand.u32 %s40, 1
          %s185 = smul.addr %s184, 16
          %s186 = scalar_lea.vmem [#allocation2], %s185
          %s187 = smul.u32 2, %s24
          %s189 = ssub.s32 256, 256
          %190 = vsyncadd %s183, %s189
          %s191 = smul.addr %s23, 2
          %s192 = sadd.s32 %s187, %s191
          %s193 = smul.addr %s192, 128
          %s194 = scalar_lea.hbm %s0, %s193
          %s195 = sshll.u32 %s186, 4
          %s196 = int_to_ptr.vmem [resolvable:$true] %s195
          %201 = dma.hbm_to_vmem [thread:$0]  %s194, 256, %s196, %s183, 128, 128, 8
        $region28: #{tpu_custom_call.1} parent=23 // pred_fallthru
          _
      $region24: #{tpu_custom_call.1} parent=5 // pred_fallthru
        _
      %p202 = scmp.le.s32.totalorder 1, %s16
      %p203 = scmp.lt.s32.totalorder %s16, 3
      %p204 = pnand %p202, %p203
      %p205 = pneg %p204
      // Predicated region
      $region29: #{tpu_custom_call.1} parent=5 // pred_check
        _
      $region30: #{tpu_custom_call.1} parent=5 // pred_check_branch
        %207 = sbr.rel (%p204) target = $region32
      $region31: #{tpu_custom_call.1} parent=5 // pred_region
        %s208 = ssub.s32 %s16, 1
        %s209 = sand.u32 %s43, 1
        %s210 = scalar_lea.sflag [#allocation3], %s209
        %s211 = sand.u32 %s43, 1
        %s212 = smul.addr %s211, 16
        %s213 = scalar_lea.vmem [#allocation2], %s212
        // Predicated region
        $region33: #{tpu_custom_call.1} parent=31 // pred_check
          %p214 = pneg %p56
        $region34: #{tpu_custom_call.1} parent=31 // pred_check_branch
          %216 = sbr.rel (%p214) target = $region36
        $region35: #{tpu_custom_call.1} parent=31 // pred_region
          %217 = dma.done %s210, 256
        $region36: #{tpu_custom_call.1} parent=31 // pred_fallthru
          _
        // Predicated region
        $region37: #{tpu_custom_call.1} parent=31 // pred_check
          %p218 = pneg %p77
        $region38: #{tpu_custom_call.1} parent=31 // pred_check_branch
          %220 = sbr.rel (%p218) target = $region40
        $region39: #{tpu_custom_call.1} parent=31 // pred_region
          %221 = dma.done [#allocation6], 1024
        $region40: #{tpu_custom_call.1} parent=31 // pred_fallthru
          _
        // Predicated region
        $region41: #{tpu_custom_call.1} parent=31 // pred_check
          %p222 = pneg %p103
        $region42: #{tpu_custom_call.1} parent=31 // pred_check_branch
          %224 = sbr.rel (%p222) target = $region44
        $region43: #{tpu_custom_call.1} parent=31 // pred_region
          %225 = dma.done [#allocation6], 256
        $region44: #{tpu_custom_call.1} parent=31 // pred_fallthru
          _
        %s226 = sand.u32 %s43, 1
        %s227 = scalar_lea.sflag [#allocation3], %s226
        %s228 = sand.u32 %s43, 1
        %s229 = smul.addr %s228, 16
        %s230 = scalar_lea.vmem [#allocation2], %s229
        %p231 = pneg %p56
        %p232 = pneg %p53
        %p233 = pneg %p77
        %p234 = pneg %p74
        %p235 = pneg %p103
        %p236 = pneg %p100
        %p237 = pneg %p131
        %p238 = pneg %p128
        %s239 = sand.u32 %s118, 1
        %s240 = scalar_lea.sflag [#allocation4], %s239
        %s241 = sand.u32 %s118, 1
        %s242 = smul.addr %s241, 16
        %s243 = scalar_lea.vmem [#allocation8], %s242
        %s244 = smul.u32 2, %s26
        %s245 = smul.u32 2, %s26
        %s246 = smul.u32 2, %s26
        %v247 = vld [vmem:[%s213] sm:$0xff]
        %v248 = vld [vmem:[%s213 + $0x8] sm:$0xff]
        %v249 = vld [vmem:[#allocation5] sm:$0xff]
        %v250 = vld [vmem:[#allocation5 + $0x8] sm:$0xff]
        %v251 = vld [vmem:[#allocation5 + $0x10] sm:$0xff]
        %v252 = vld [vmem:[#allocation5 + $0x18] sm:$0xff]
        %v253 = vld [vmem:[#allocation5 + $0x20] sm:$0xff]
        %v254 = vld [vmem:[#allocation5 + $0x28] sm:$0xff]
        %v255 = vld [vmem:[#allocation5 + $0x30] sm:$0xff]
        %v256 = vld [vmem:[#allocation5 + $0x38] sm:$0xff]
        %v257 = vld [vmem:[#allocation7] sm:$0xff]
        %v258 = vld [vmem:[#allocation7 + $0x8] sm:$0xff]
        %vm259 = vcmask 523264
        %v261 = vsel %vm259, %v247, 0
        %v264 = vsel %vm259, %v248, 0
        %266 = vmatprep.subr.mxu0 0.0
        %267 = vmatpush1.msra.mxu0 0.0
        %268 = vmatprep.subr.mxu0 0.0
        %269 = vmatpush1.msra.mxu0 0.0
        %270 = vmatprep.subr.mxu0 0.0
        %271 = vmatpush1.msra.mxu0 0.0
        %272 = vmatprep.subr.mxu0 0.0
        %273 = vmatpush1.msra.mxu0 0.0
        %274 = vmatprep.subr.mxu0 0.0
        %275 = vmatpush1.msra.mxu0 0.0
        %276 = vmatprep.subr.mxu0 0.0
        %277 = vmatpush1.msra.mxu0 0.0
        %278 = vmatprep.subr.mxu0 0.0
        %279 = vmatpush1.msra.mxu0 0.0
        %280 = vmatprep.subr.mxu0 0.0
        %281 = vmatpush1.msra.mxu0 0.0
        %282 = vmatprep.subr.mxu0 0.0
        %283 = vmatpush1.msra.mxu0 %v256
        %284 = vmatprep.subr.mxu0 0.0
        %285 = vmatpush1.msra.mxu0 %v255
        %286 = vmatprep.subr.mxu0 0.0
        %287 = vmatpush1.msra.mxu0 %v254
        %288 = vmatprep.subr.mxu0 0.0
        %289 = vmatpush1.msra.mxu0 %v253
        %290 = vmatprep.subr.mxu0 0.0
        %291 = vmatpush1.msra.mxu0 %v252
        %292 = vmatprep.subr.mxu0 0.0
        %293 = vmatpush1.msra.mxu0 %v251
        %294 = vmatprep.subr.mxu0 0.0
        %295 = vmatpush1.msra.mxu0 %v250
        %296 = vmatprep.subr.mxu0 0.0
        %297 = vmatpush1.msra.mxu0 %v249
        %298 = vmatprep.subr.mxu0 0.0
        %299 = vmatpush2.msra.mxu0 0.0
        %300 = vmatprep.subr.mxu0 0.0
        %301 = vmatpush2.msra.mxu0 0.0
        %302 = vmatprep.subr.mxu0 0.0
        %303 = vmatpush2.msra.mxu0 0.0
        %304 = vmatprep.subr.mxu0 0.0
        %305 = vmatpush2.msra.mxu0 0.0
        %306 = vmatprep.subr.mxu0 0.0
        %307 = vmatpush2.msra.mxu0 0.0
        %308 = vmatprep.subr.mxu0 0.0
        %309 = vmatpush2.msra.mxu0 0.0
        %310 = vmatprep.subr.mxu0 0.0
        %311 = vmatpush2.msra.mxu0 0.0
        %312 = vmatprep.subr.mxu0 0.0
        %313 = vmatpush2.msra.mxu0 0.0
        %314 = vmatprep.subr.mxu0 0.0
        %315 = vmatpush2.msra.mxu0 0.0
        %316 = vmatprep.subr.mxu0 0.0
        %317 = vmatpush2.msra.mxu0 0.0
        %318 = vmatprep.subr.mxu0 0.0
        %319 = vmatpush2.msra.mxu0 0.0
        %320 = vmatprep.subr.mxu0 0.0
        %321 = vmatpush2.msra.mxu0 0.0
        %322 = vmatprep.subr.mxu0 0.0
        %323 = vmatpush2.msra.mxu0 0.0
        %324 = vmatprep.subr.mxu0 0.0
        %325 = vmatpush2.msra.mxu0 0.0
        %326 = vmatprep.subr.mxu0 0.0
        %327 = vmatpush2.msra.mxu0 0.0
        %328 = vmatprep.subr.mxu0 0.0
        %329 = vmatpush2.msra.mxu0 0.0
        %330 = vmatprep.mubr.f32.mxu0 0.0
        %331 = vmatmul.mubr.f32.gmra.mxu0 %v261
        %v332 = vpop.f32.mrf.mxu0
        %v333 = vadd.f32 %v257, %v332
        %v334 = vpop.f32.mrf.mxu0
        %335 = vmatprep.mubr.f32.mxu0 0.0
        %336 = vmatmul.mubr.f32.gmra.mxu0 %v264
        %v337 = vpop.f32.mrf.mxu0
        %v338 = vadd.f32 %v258, %v337
        %v339 = vpop.f32.mrf.mxu0
        %340 = vdwg.mxu0
        %341 = vst [vmem:[%s243] sm:$0xff] %v333
        %342 = vst [vmem:[%s243 + $0x8] sm:$0xff] %v338
        %s343 = sand.u32 %s118, 1
        %s344 = scalar_lea.sflag [#allocation4], %s343
        %s345 = sand.u32 %s118, 1
        %s346 = smul.addr %s345, 16
        %s347 = scalar_lea.vmem [#allocation8], %s346
        // Predicated region
        $region45: #{tpu_custom_call.1} parent=31 // pred_check
          %p348 = pneg %p128
        $region46: #{tpu_custom_call.1} parent=31 // pred_check_branch
          %350 = sbr.rel (%p348) target = $region48
        $region47: #{tpu_custom_call.1} parent=31 // pred_region
          %s351 = smul.u32 2, %s26
          %s353 = ssub.s32 256, 256
          %354 = vsyncadd %s344, %s353
          %s355 = smul.addr %s25, 2
          %s356 = sadd.s32 %s351, %s355
          %s357 = smul.addr %s356, 128
          %s358 = scalar_lea.hbm %s3, %s357
          %s359 = sshll.u32 %s347, 4
          %s360 = int_to_ptr.vmem [resolvable:$true] %s359
          %365 = dma.vmem_to_hbm [thread:$0]  %s360, 256, %s358, %s344, 128, 128, 8
        $region48: #{tpu_custom_call.1} parent=31 // pred_fallthru
          _
      $region32: #{tpu_custom_call.1} parent=5 // pred_fallthru
        _
      %p366 = scmp.le.s32.totalorder 2, %s16
      // Predicated region
      $region49: #{tpu_custom_call.1} parent=5 // pred_check
        %p367 = pneg %p366
      $region50: #{tpu_custom_call.1} parent=5 // pred_check_branch
        %369 = sbr.rel (%p367) target = $region52
      $region51: #{tpu_custom_call.1} parent=5 // pred_region
        %s370 = ssub.s32 %s16, 2
        // Predicated region
        $region53: #{tpu_custom_call.1} parent=51 // pred_check
          %p371 = pneg %p134
        $region54: #{tpu_custom_call.1} parent=51 // pred_check_branch
          %373 = sbr.rel (%p371) target = $region56
        $region55: #{tpu_custom_call.1} parent=51 // pred_region
          %s374 = sand.u32 %s119, 1
          %s375 = scalar_lea.sflag [#allocation4], %s374
          %s376 = sand.u32 %s119, 1
          %s377 = smul.addr %s376, 16
          %s378 = scalar_lea.vmem [#allocation8], %s377
          %379 = dma.done %s375, 256
        $region56: #{tpu_custom_call.1} parent=51 // pred_fallthru
          _
      $region52: #{tpu_custom_call.1} parent=5 // pred_fallthru
        _
    $region6: #{tpu_custom_call.1} parent=1 // loop_footer
      %s20 = sadd.s32 1, %s16
    $region7: #{tpu_custom_call.1} parent=1 // loop_footer_branch
      %15 = sbr.rel target = $region3
    $region8: #{tpu_custom_call.1} parent=1 // loop_exit
      _
    %380 = vsyncpa [#allocation3], 1
    %s381 = scalar_lea.sflag [#allocation3], 1
    %382 = vsyncpa %s381, 1
    %383 = vsyncpa [#allocation6], 1
    %384 = vsyncpa [#allocation4], 1
    %s385 = scalar_lea.sflag [#allocation4], 1
    %386 = vsyncpa %s385, 1

</llo_original>
